<compile_context>
chip_gen: v7x
topology: tpu7x:2x2x1
jax: 0.10.0
libtpu: 0.0.40
codegen_flags: <defaults>
</compile_context>

<pallas_src>
from collections import deque

import numpy as np

import jax
import jax.numpy as jnp
from jax.experimental import pallas as pl
from jax.experimental.pallas import tpu as pltpu


# ----------------------------------------------------------------------------
# Host-side graph preprocessing (no Pallas equivalent).
# TODO(synk): networkx BFS shortest paths + scipy eigh are host graph
# algorithms; they are reproduced in numpy here, not in the kernel.
# ----------------------------------------------------------------------------
def get_wsp_matrix(edge_index, num_nodes, max_nodes):
    """Weighted-shortest-path matrix, matching get_wsp_encoding semantics."""
    adj = [[] for _ in range(num_nodes)]
    for s, t in zip(edge_index[0], edge_index[1]):
        s, t = int(s), int(t)
        adj[s].append(t)
        adj[t].append(s)  # nx.Graph is undirected
    spl = np.zeros((num_nodes, max_nodes), dtype=np.float32)
    for i in range(num_nodes):
        dist = np.full(num_nodes, -1, dtype=np.int64)
        dist[i] = 0
        q = deque([i])
        while q:
            u = q.popleft()
            for v in adj[u]:
                if dist[v] < 0:
                    dist[v] = dist[u] + 1
                    q.append(v)
        for j in range(num_nodes):
            if i != j and j < max_nodes:
                spl[i, j] = float(dist[j]) if dist[j] >= 0 else float(max_nodes)
    return spl


def get_laplacian_eigvecs(edge_index, num_nodes, max_nodes):
    """Sym-normalized Laplacian eigenvectors, padded to (num_nodes, max_nodes)."""
    A = np.zeros((num_nodes, num_nodes), dtype=np.float64)
    A[edge_index[0], edge_index[1]] = 1.0
    deg = A.sum(axis=1)
    dinv = np.where(deg > 0, 1.0 / np.sqrt(np.maximum(deg, 1e-12)), 0.0)
    L = np.eye(num_nodes) - dinv[:, None] * A * dinv[None, :]
    _, eigvecs = np.linalg.eigh(L)  # ascending order, same as scipy.linalg.eigh
    padded = np.zeros((num_nodes, max_nodes), dtype=np.float32)
    padded[:, :num_nodes] = eigvecs.astype(np.float32)
    return padded


# ----------------------------------------------------------------------------
# Host-side parameter / input packing (done once; enables the fused kernel).
# ----------------------------------------------------------------------------
def pack_inputs(wsp_matrix, le_matrix):
    """(N, max_nodes) x 2 -> (N, 2*max_nodes)."""
    return np.concatenate([np.asarray(wsp_matrix), np.asarray(le_matrix)], axis=-1)


def pack_params(W_wsp, b_wsp, W_le, b_le):
    """PyTorch Linear params ((out,in) weights) -> block-diag weight + cat bias.

    x_packed @ w_block + b_cat == concat([wsp @ W_wsp.T + b_wsp,
                                          le  @ W_le.T  + b_le], axis=-1)
    """
    d_half, max_nodes = np.asarray(W_wsp).shape
    d_model = 2 * d_half
    w_block = np.zeros((2 * max_nodes, d_model), dtype=np.float32)
    w_block[:max_nodes, :d_half] = np.asarray(W_wsp, dtype=np.float32).T
    w_block[max_nodes:, d_half:] = np.asarray(W_le, dtype=np.float32).T
    b_cat = np.concatenate(
        [np.asarray(b_wsp, dtype=np.float32), np.asarray(b_le, dtype=np.float32)]
    ).reshape(1, d_model)
    return w_block, b_cat


# ----------------------------------------------------------------------------
# Pallas kernel: one fused matmul (block-diagonal weight) + bias, single store.
# ----------------------------------------------------------------------------
def pe_kernel(x_ref, w_ref, b_ref, out_ref):
    acc = jnp.dot(x_ref[...], w_ref[...], preferred_element_type=jnp.float32)
    out_ref[...] = (acc + b_ref[...]).astype(out_ref.dtype)


def _num_tensorcores():
    """Best-effort TensorCore count (1 on v5e/v6e, 2 on v7x); defaults to 1."""
    try:
        info = pltpu.get_tpu_info()
        for attr in ("num_tensorcores", "tensorcores_per_chip", "num_cores",
                     "core_count"):
            v = getattr(info, attr, None)
            if isinstance(v, int) and v > 0:
                return v
    except Exception:
        pass
    return 1


def _select_row_tile(N, max_tn, num_tcs):
    """Row tile TN.

    As large as allowed (amortizes the ~0.35us per-grid-step overhead against
    the HBM-bound data movement).  Only on multi-TensorCore chips (v7x) do we
    shrink toward >= 2 grid steps per core so the 'parallel' row axis actually
    load-balances across the cores — never below 256 rows.
    """
    n_rows8 = ((N + 7) // 8) * 8            # sublane-aligned ceiling
    tn = min(max_tn, n_rows8)
    if num_tcs > 1:
        per_step = ((pl.cdiv(N, 2 * num_tcs) + 7) // 8) * 8
        tn = min(tn, max(256, per_step))
    return max(8, min(tn, n_rows8))


def graph_bert_positional_encoding(x_packed, w_block, b_cat, *, max_tn=2048,
                                   out_dtype=jnp.float32, force_pallas=False,
                                   small_n_threshold=512):
    """x_packed: (N, 2*max_nodes); w_block: (2*max_nodes, d_model); b_cat: (1, d_model)."""
    x_packed = jnp.asarray(x_packed)
    w_block = jnp.asarray(w_block)
    b_cat = jnp.asarray(b_cat)
    N, K2 = x_packed.shape
    d_model = w_block.shape[1]

    # Small-N fast path: pallas_call dispatch + pipeline prologue/epilogue
    # dominate for tiny graphs; XLA's fused dot is strictly faster there.
    if N < small_n_threshold and not force_pallas:
        out = jnp.dot(x_packed, w_block, preferred_element_type=jnp.float32) + b_cat
        return out.astype(out_dtype)

    TN = _select_row_tile(N, max_tn, _num_tensorcores())
    n_tiles = pl.cdiv(N, TN)

    # No padding / no trailing slice: the grid covers N with a ragged last
    # tile; Pallas masks the out-of-bounds rows of the final block's store.
    return pl.pallas_call(
        pe_kernel,
        out_shape=jax.ShapeDtypeStruct((N, d_model), out_dtype),
        grid=(n_tiles,),
        in_specs=[
            pl.BlockSpec((TN, K2), lambda i: (i, 0)),          # packed wsp|le rows
            pl.BlockSpec((K2, d_model), lambda i: (0, 0)),     # block-diag weight (grid-invariant)
            pl.BlockSpec((1, d_model), lambda i: (0, 0)),      # concatenated bias (grid-invariant)
        ],
        out_specs=pl.BlockSpec((TN, d_model), lambda i: (i, 0)),
        compiler_params=pltpu.CompilerParams(
            dimension_semantics=("parallel",)),
    )(x_packed, w_block, b_cat)


if __name__ == "__main__":
    # Module hyper-params (small, consistent with the module's forward).
    d_model = 256
    max_nodes = 16
    num_nodes = 8
    d_half = d_model // 2

    # Deterministic small graph: ring of 8 nodes (symmetric edge_index).
    src = np.arange(num_nodes)
    dst = (src + 1) % num_nodes
    edge_index = np.stack([np.concatenate([src, dst]),
                           np.concatenate([dst, src])]).astype(np.int64)

    wsp_matrix = get_wsp_matrix(edge_index, num_nodes, max_nodes)
    le_matrix = get_laplacian_eigvecs(edge_index, num_nodes, max_nodes)

    # Deterministic parameter init (PyTorch Linear weight shape: (out, in)).
    key = jax.random.PRNGKey(0)
    k1, k2, k3, k4, k5 = jax.random.split(key, 5)
    W_wsp = jax.random.normal(k1, (d_half, max_nodes), jnp.float32) * 0.02
    b_wsp = jax.random.normal(k2, (d_half,), jnp.float32) * 0.02
    W_le = jax.random.normal(k3, (d_half, max_nodes), jnp.float32) * 0.02
    b_le = jax.random.normal(k4, (d_half,), jnp.float32) * 0.02

    # Host-side packing (fused-matmul formulation).
    x_packed = jnp.asarray(pack_inputs(wsp_matrix, le_matrix))
    w_block_np, b_cat_np = pack_params(np.asarray(W_wsp), np.asarray(b_wsp),
                                       np.asarray(W_le), np.asarray(b_le))
    w_block = jnp.asarray(w_block_np)
    b_cat = jnp.asarray(b_cat_np)

    # Reference (plain JAX) of the original forward semantics:
    # cat([wsp_encoder(wsp), le_encoder(le)], dim=-1).
    wsp_j = jnp.asarray(wsp_matrix)
    le_j = jnp.asarray(le_matrix)
    ref = jnp.concatenate(
        [wsp_j @ W_wsp.T + b_wsp, le_j @ W_le.T + b_le], axis=-1)

    # (1) Module-sized forward: small-N fast path (plain fused dot).
    out_small = jax.block_until_ready(
        graph_bert_positional_encoding(x_packed, w_block, b_cat))
    assert out_small.shape == (num_nodes, d_model)
    assert jnp.allclose(out_small, ref, atol=1e-5, rtol=1e-5), "fast path mismatch"

    # (2) Same inputs forced through the Pallas kernel (single 8-row tile).
    out_pallas_small = jax.block_until_ready(
        graph_bert_positional_encoding(x_packed, w_block, b_cat,
                                       force_pallas=True))
    assert out_pallas_small.shape == (num_nodes, d_model)
    assert jnp.allclose(out_pallas_small, ref, atol=1e-5, rtol=1e-5), \
        "pallas (small) mismatch"

    # (3) Larger row batch exercising multiple grid tiles + a ragged last tile
    #     (N=1000 with TN=256 -> 4 tiles, last tile masked).
    N_big = 1000
    xb = jax.random.normal(k5, (N_big, 2 * max_nodes), jnp.float32)
    ref_big = xb @ w_block + b_cat
    out_big = jax.block_until_ready(
        graph_bert_positional_encoding(xb, w_block, b_cat,
                                       force_pallas=True, max_tn=256))
    assert out_big.shape == (N_big, d_model)
    assert jnp.allclose(out_big, ref_big, atol=1e-3, rtol=1e-3), \
        "pallas (big, ragged) mismatch"

    # (4) Optional bf16 output (halves the dominant HBM write traffic).
    out_bf16 = jax.block_until_ready(
        graph_bert_positional_encoding(xb, w_block, b_cat,
                                       out_dtype=jnp.bfloat16,
                                       force_pallas=True, max_tn=256))
    assert out_bf16.dtype == jnp.bfloat16
    assert jnp.allclose(out_bf16.astype(jnp.float32), ref_big,
                        atol=2e-2, rtol=5e-2), "pallas (bf16) mismatch"

    print("KERNEL_OK")
</pallas_src>

<mosaic_0001>
module attributes {stable_mosaic.version = 11 : i64} {
  func.func @pe_kernel(%arg0: i32, %arg1: memref<8x32xf32, #tpu.memory_space<vmem>>, %arg2: memref<32x256xf32, #tpu.memory_space<vmem>>, %arg3: memref<1x256xf32, #tpu.memory_space<vmem>>, %arg4: memref<8x256xf32, #tpu.memory_space<vmem>>) attributes {dimension_semantics = [#tpu.dimension_semantics<parallel>], iteration_bounds = array<i64: 1>, scalar_prefetch = 0 : i64, scratch_operands = 0 : i64, tpu.core_type = #tpu.core_type<tc>, window_params = [{transform_indices = @transform_0, window_bounds = array<i64: 8, 32>}, {pipeline_mode = #tpu.pipeline_mode<synchronous>, transform_indices = @transform_1, window_bounds = array<i64: 32, 256>}, {pipeline_mode = #tpu.pipeline_mode<synchronous>, transform_indices = @transform_2, window_bounds = array<i64: 1, 256>}, {transform_indices = @transform_3, window_bounds = array<i64: 8, 256>}]} {
    %c0 = arith.constant 0 : index
    %c0_0 = arith.constant 0 : index
    %0 = vector.load %arg1[%c0, %c0_0] : memref<8x32xf32, #tpu.memory_space<vmem>>, vector<8x32xf32>
    %c0_1 = arith.constant 0 : index
    %c0_2 = arith.constant 0 : index
    %1 = vector.load %arg2[%c0_1, %c0_2] : memref<32x256xf32, #tpu.memory_space<vmem>>, vector<32x256xf32>
    %cst = arith.constant dense<0.000000e+00> : vector<8x256xf32>
    %2 = tpu.matmul %0, %1, %cst {dimension_numbers = #tpu.dot_dimension_numbers<[1], [0], [0], [1], [0, 0, 1, 1], [], []>} : vector<8x32xf32>, vector<32x256xf32>, vector<8x256xf32> -> vector<8x256xf32>
    %c0_3 = arith.constant 0 : index
    %c0_4 = arith.constant 0 : index
    %3 = vector.load %arg3[%c0_3, %c0_4] : memref<1x256xf32, #tpu.memory_space<vmem>>, vector<1x256xf32>
    %4 = vector.broadcast %3 : vector<1x256xf32> to vector<8x256xf32>
    %5 = arith.addf %2, %4 : vector<8x256xf32>
    %c0_5 = arith.constant 0 : index
    %c0_6 = arith.constant 0 : index
    %6 = vector.load %arg4[%c0_5, %c0_6] : memref<8x256xf32, #tpu.memory_space<vmem>>, vector<8x256xf32>
    tpu.vector_store %arg4[%c0_5, %c0_6], %5 {strides = array<i32>} : memref<8x256xf32, #tpu.memory_space<vmem>>, vector<8x256xf32>,
    return
  }
  func.func @transform_0(%arg0: i32) -> (i32, i32) {
    %c0_i32 = arith.constant 0 : i32
    %c0_i32_0 = arith.constant 0 : i32
    return %arg0, %c0_i32 : i32, i32
  }
  func.func @transform_1(%arg0: i32) -> (i32, i32) {
    %c0_i32 = arith.constant 0 : i32
    %c0_i32_0 = arith.constant 0 : i32
    %c0_i32_1 = arith.constant 0 : i32
    return %c0_i32, %c0_i32_0 : i32, i32
  }
  func.func @transform_2(%arg0: i32) -> (i32, i32) {
    %c0_i32 = arith.constant 0 : i32
    %c0_i32_0 = arith.constant 0 : i32
    %c0_i32_1 = arith.constant 0 : i32
    return %c0_i32, %c0_i32_0 : i32, i32
  }
  func.func @transform_3(%arg0: i32) -> (i32, i32) {
    %c0_i32 = arith.constant 0 : i32
    %c0_i32_0 = arith.constant 0 : i32
    return %arg0, %c0_i32 : i32, i32
  }
}

</mosaic_0001>

<llo_original>
// kernel: tpu_custom_call.1
$region0: #{tpu_custom_call.1}
  #allocation0 [shape = 'u32[]', space=smem, size = 0x4, offset = 0x4, fixed_abs, tag = 'smem constant byte address 0x4 - core index']
  #allocation1 [shape = 'u32[144,128]{1,0:T(1,128)}', space=vmem, size = 0x12000, scoped, tag = 'internal scratch']
  %s0 = inlined_call_operand.hbm [shape: f32[8,32], index: 0, kind: input, shape index: {}]
  %s1 = inlined_call_operand.hbm [shape: f32[32,256], index: 1, kind: input, shape index: {}]
  %s2 = inlined_call_operand.vmem [shape: f32[1,256], index: 2, kind: input, shape index: {}]
  %s3 = inlined_call_operand.hbm [shape: f32[8,256], index: 3, kind: output, shape index: {}]
  %s4 = sld [smem:[#allocation0]]
  $region30: #{tpu_custom_call.1} parent=0
    _
  %s6 = ssub.s32 1, %s4
  %s7 = scalar_select 0, %s6, %s4
  $region1: #{tpu_custom_call.1} parent=0
    #allocation2 [shape = 'u8[4096]{0}', space=vmem, size = 0x1000, scoped, tag = 'input window, operand 0, single buffered']
    #allocation3 [shape = 's32[1]{0}', space=sflag, size = 0x4, scoped, tag = 'scoped memory for tpu_custom_call.1']
    #allocation4 [shape = 's32[1]{0}', space=sflag, size = 0x4, scoped, tag = 'scoped memory for tpu_custom_call.1']
    #allocation5 [shape = 'u8[32768]{0}', space=vmem, size = 0x8000, scoped, tag = 'input window, operand 1, single buffered']
    #allocation6 [shape = 's32[1]{0}', space=sflag, size = 0x4, scoped, tag = 'scoped memory for tpu_custom_call.1']
    #allocation7 [shape = 'u8[8192]{0}', space=vmem, size = 0x2000, scoped, tag = 'output window, operand 0, single buffered']
    %8 = vsyncpa [#allocation3], 0
    %9 = vsyncpa [#allocation6], 0
    %10 = vsyncpa [#allocation4], 0
    // Predicated region
    $region2: #{tpu_custom_call.1} parent=1 // pred_check
      _
    $region3: #{tpu_custom_call.1} parent=1 // pred_check_branch
      %12 = sbr.rel (0) target = $region5
    $region4: #{tpu_custom_call.1} parent=1 // pred_region
      %s14 = ssub.s32 128, 128
      %15 = vsyncadd [#allocation3], %s14
      %s17 = sshll.u32 [#allocation2], 4
      %s18 = int_to_ptr.vmem [resolvable:$true] %s17
      %20 = dma.hbm_to_vmem [thread:$0]  %s0, 128, %s18, [#allocation3]
    $region5: #{tpu_custom_call.1} parent=1 // pred_fallthru
      _
    // Predicated region
    $region6: #{tpu_custom_call.1} parent=1 // pred_check
      _
    $region7: #{tpu_custom_call.1} parent=1 // pred_check_branch
      %22 = sbr.rel (0) target = $region9
    $region8: #{tpu_custom_call.1} parent=1 // pred_region
      %s24 = ssub.s32 1024, 1024
      %25 = vsyncadd [#allocation6], %s24
      %s26 = sshll.u32 [#allocation5], 4
      %s27 = int_to_ptr.vmem [resolvable:$true] %s26
      %32 = dma.hbm_to_vmem [thread:$0]  %s1, 1024, %s27, [#allocation6], 256, 256, 16
    $region9: #{tpu_custom_call.1} parent=1 // pred_fallthru
      _
    // Predicated region
    $region10: #{tpu_custom_call.1} parent=1 // pred_check
      _
    $region11: #{tpu_custom_call.1} parent=1 // pred_check_branch
      %34 = sbr.rel (0) target = $region13
    $region12: #{tpu_custom_call.1} parent=1 // pred_region
      _
    $region13: #{tpu_custom_call.1} parent=1 // pred_fallthru
      _
    // Predicated region
    $region14: #{tpu_custom_call.1} parent=1 // pred_check
      _
    $region15: #{tpu_custom_call.1} parent=1 // pred_check_branch
      %36 = sbr.rel (0) target = $region17
    $region16: #{tpu_custom_call.1} parent=1 // pred_region
      %37 = dma.done [#allocation3], 128
    $region17: #{tpu_custom_call.1} parent=1 // pred_fallthru
      _
    // Predicated region
    $region18: #{tpu_custom_call.1} parent=1 // pred_check
      _
    $region19: #{tpu_custom_call.1} parent=1 // pred_check_branch
      %39 = sbr.rel (0) target = $region21
    $region20: #{tpu_custom_call.1} parent=1 // pred_region
      %40 = dma.done [#allocation6], 1024
    $region21: #{tpu_custom_call.1} parent=1 // pred_fallthru
      _
    %v41 = vld [vmem:[#allocation2] sm:$0xff]
    %v42 = vld [vmem:[#allocation5] sm:$0xff]
    %v43 = vld [vmem:[#allocation5 + $0x8] sm:$0xff]
    %v44 = vld [vmem:[#allocation5 + $0x10] sm:$0xff]
    %v45 = vld [vmem:[#allocation5 + $0x18] sm:$0xff]
    %v46 = vld [vmem:[#allocation5 + $0x20] sm:$0xff]
    %v47 = vld [vmem:[#allocation5 + $0x28] sm:$0xff]
    %v48 = vld [vmem:[#allocation5 + $0x30] sm:$0xff]
    %v49 = vld [vmem:[#allocation5 + $0x38] sm:$0xff]
    %v50 = vld [vmem:[%s2] sm:$0x3]
    %v52 = vlaneseq
    %v53 = vshrl.u32 %v52, 7
    %v54 = vsub.s32 0, %v53
    %v55 = vrot.slane %v50, %v54
    %v56 = vlaneseq
    %v57 = vshrl.u32 %v56, 7
    %v58 = vsub.s32 1, %v57
    %v59 = vrot.slane %v50, %v58
    %vm62 = vcmask 261120
    %v64 = vsel %vm62, %v41, 0
    %66 = vmatprep.subr.mxu0 %v43
    %67 = vmatpush1.msra.mxu0 %v42
    %68 = vmatprep.subr.mxu0 %v45
    %69 = vmatpush1.msra.mxu0 %v44
    %70 = vmatprep.subr.mxu0 %v47
    %71 = vmatpush1.msra.mxu0 %v46
    %72 = vmatprep.subr.mxu0 %v49
    %73 = vmatpush1.msra.mxu0 %v48
    %74 = vmatprep.subr.mxu0 0.0
    %75 = vmatpush1.msra.mxu0 0.0
    %76 = vmatprep.subr.mxu0 0.0
    %77 = vmatpush1.msra.mxu0 0.0
    %78 = vmatprep.subr.mxu0 0.0
    %79 = vmatpush1.msra.mxu0 0.0
    %80 = vmatprep.subr.mxu0 0.0
    %81 = vmatpush1.msra.mxu0 0.0
    %82 = vmatprep.subr.mxu0 0.0
    %83 = vmatpush1.msra.mxu0 0.0
    %84 = vmatprep.subr.mxu0 0.0
    %85 = vmatpush1.msra.mxu0 0.0
    %86 = vmatprep.subr.mxu0 0.0
    %87 = vmatpush1.msra.mxu0 0.0
    %88 = vmatprep.subr.mxu0 0.0
    %89 = vmatpush1.msra.mxu0 0.0
    %90 = vmatprep.subr.mxu0 0.0
    %91 = vmatpush1.msra.mxu0 0.0
    %92 = vmatprep.subr.mxu0 0.0
    %93 = vmatpush1.msra.mxu0 0.0
    %94 = vmatprep.subr.mxu0 0.0
    %95 = vmatpush1.msra.mxu0 0.0
    %96 = vmatprep.subr.mxu0 0.0
    %97 = vmatpush1.msra.mxu0 0.0
    %98 = vmatprep.subr.mxu0 0.0
    %99 = vmatpush1.msra.mxu0 0.0
    %100 = vmatprep.subr.mxu0 0.0
    %101 = vmatpush1.msra.mxu0 0.0
    %102 = vmatprep.subr.mxu0 0.0
    %103 = vmatpush1.msra.mxu0 0.0
    %104 = vmatprep.subr.mxu0 0.0
    %105 = vmatpush1.msra.mxu0 0.0
    %106 = vmatprep.subr.mxu0 0.0
    %107 = vmatpush1.msra.mxu0 0.0
    %108 = vmatprep.subr.mxu0 0.0
    %109 = vmatpush1.msra.mxu0 0.0
    %110 = vmatprep.subr.mxu0 0.0
    %111 = vmatpush1.msra.mxu0 0.0
    %112 = vmatprep.subr.mxu0 0.0
    %113 = vmatpush1.msra.mxu0 0.0
    %114 = vmatprep.subr.mxu0 0.0
    %115 = vmatpush1.msra.mxu0 0.0
    %116 = vmatprep.subr.mxu0 0.0
    %117 = vmatpush1.msra.mxu0 0.0
    %118 = vmatprep.subr.mxu0 0.0
    %119 = vmatpush1.msra.mxu0 0.0
    %120 = vmatprep.subr.mxu0 0.0
    %121 = vmatpush1.msra.mxu0 0.0
    %122 = vmatprep.subr.mxu0 0.0
    %123 = vmatpush1.msra.mxu0 0.0
    %124 = vmatprep.subr.mxu0 0.0
    %125 = vmatpush1.msra.mxu0 0.0
    %126 = vmatprep.subr.mxu0 0.0
    %127 = vmatpush1.msra.mxu0 0.0
    %128 = vmatprep.subr.mxu0 0.0
    %129 = vmatpush1.msra.mxu0 0.0
    %130 = vmatprep.mubr.f32.mxu0 0.0
    %131 = vmatmul.mubr.f32.gmra.mrb[0].mxu0 %v64
    %v132 = vpop.f32.mrb[0].mxu0
    %v133 = vadd.f32 %v55, %v132
    %v134 = vpop.f32.mrb[0].mxu0
    %v135 = vadd.f32 %v59, %v134
    %136 = vdwg.mxu0
    %137 = vst [vmem:[#allocation7] sm:$0xff] %v133
    %138 = vst [vmem:[#allocation7 + $0x8] sm:$0xff] %v135
    // Predicated region
    $region22: #{tpu_custom_call.1} parent=1 // pred_check
      _
    $region23: #{tpu_custom_call.1} parent=1 // pred_check_branch
      %140 = sbr.rel (0) target = $region25
    $region24: #{tpu_custom_call.1} parent=1 // pred_region
      %s142 = ssub.s32 256, 256
      %143 = vsyncadd [#allocation4], %s142
      %s145 = sshll.u32 [#allocation7], 4
      %s146 = int_to_ptr.vmem [resolvable:$true] %s145
      %148 = dma.vmem_to_hbm [thread:$0]  %s146, 256, %s3, [#allocation4]
    $region25: #{tpu_custom_call.1} parent=1 // pred_fallthru
      _
    // Predicated region
    $region26: #{tpu_custom_call.1} parent=1 // pred_check
      _
    $region27: #{tpu_custom_call.1} parent=1 // pred_check_branch
      %150 = sbr.rel (0) target = $region29
    $region28: #{tpu_custom_call.1} parent=1 // pred_region
      %151 = dma.done [#allocation4], 256
    $region29: #{tpu_custom_call.1} parent=1 // pred_fallthru
      _
    %152 = vsyncpa [#allocation3], 1
    %153 = vsyncpa [#allocation6], 1
    %154 = vsyncpa [#allocation4], 1

</llo_original>
